<compile_context>
chip_gen: v6e
topology: v6e:2x2x1
jax: 0.10.0
libtpu: 0.0.40
codegen_flags: <defaults>
</compile_context>

<pallas_src>
import functools

import jax
import jax.numpy as jnp
from jax import lax
from jax.experimental import pallas as pl
from jax.experimental.pallas import tpu as pltpu

_SUBLANES = 8
_LANES = 128
_MAX_BLOCK_ROWS = 2048  # 2048 x 128 f32 = 1 MiB per block


def _round_up(x, m):
    return ((x + m - 1) // m) * m


def _cdiv(a, b):
    return -(-a // b)


# ---------------------------------------------------------------------------
# Kernels
# ---------------------------------------------------------------------------

def _row_mask(ref_shape, p, i, inner_tiles, n_rows):
    """Boolean mask that zeroes rows past the logical end of the array."""
    block_rows = ref_shape[0]
    block_idx = p * inner_tiles + i          # unclamped global block index
    row_start = block_idx * block_rows
    row_ids = row_start + lax.broadcasted_iota(jnp.int32, ref_shape, 0)
    return row_ids < n_rows


def _fused_sq_err_kernel(r_ref, f_ref, out_ref, acc_ref, *,
                         n_rows, inner_tiles, need_mask):
    """acc += (real - 1)^2 + fake^2 over row-tiles; drain on the last step."""
    p = pl.program_id(0)
    i = pl.program_id(1)

    @pl.when(i == 0)
    def _():
        acc_ref[...] = jnp.zeros_like(acc_ref)

    dr = r_ref[...].astype(jnp.float32) - 1.0
    df = f_ref[...].astype(jnp.float32)
    contrib = dr * dr + df * df

    if need_mask:
        mask = _row_mask(r_ref.shape, p, i, inner_tiles, n_rows)
        contrib = jnp.where(mask, contrib, 0.0)

    acc_ref[...] += contrib

    @pl.when(i == pl.num_programs(1) - 1)
    def _():
        out_ref[0, 0] = jnp.sum(acc_ref[...])


def _sq_err_kernel(x_ref, out_ref, acc_ref, *,
                   c, n_rows, inner_tiles, need_mask):
    """acc += (x - c)^2 over row-tiles; drain on the last step."""
    p = pl.program_id(0)
    i = pl.program_id(1)

    @pl.when(i == 0)
    def _():
        acc_ref[...] = jnp.zeros_like(acc_ref)

    d = x_ref[...].astype(jnp.float32) - c
    contrib = d * d

    if need_mask:
        mask = _row_mask(x_ref.shape, p, i, inner_tiles, n_rows)
        contrib = jnp.where(mask, contrib, 0.0)

    acc_ref[...] += contrib

    @pl.when(i == pl.num_programs(1) - 1)
    def _():
        out_ref[0, 0] = jnp.sum(acc_ref[...])


# ---------------------------------------------------------------------------
# Wrappers
# ---------------------------------------------------------------------------

def _to_lane_rows(x, pad_value):
    """Flatten to a (rows, 128) lane-dense slab, padding only the last row."""
    flat = x.reshape(-1)
    n = flat.shape[0]
    rem = n % _LANES
    if rem:  # neutral pad: (pad_value - c)^2 == 0 for the matching kernel
        flat = jnp.pad(flat, (0, _LANES - rem), constant_values=pad_value)
    rows = flat.shape[0] // _LANES
    return flat.reshape(rows, _LANES), n, rows


def _grid_config(rows):
    block_rows = min(_MAX_BLOCK_ROWS, _round_up(rows, _SUBLANES))
    total_tiles = _cdiv(rows, block_rows)
    num_parts = 2 if total_tiles >= 2 else 1        # v7x: 2 TensorCores
    inner_tiles = _cdiv(total_tiles, num_parts)
    need_mask = (rows % block_rows != 0) or (num_parts * inner_tiles != total_tiles)
    return block_rows, total_tiles, num_parts, inner_tiles, need_mask


def _make_index_map(inner_tiles, total_tiles):
    def index_map(p, i):
        # Clamp so over-partitioned steps re-read the last valid block
        # (their contribution is masked to zero) instead of an OOB DMA.
        return (jnp.minimum(p * inner_tiles + i, total_tiles - 1), 0)
    return index_map


def _fused_sum_sq(real, fake):
    """sum((real - 1)^2) + sum(fake^2) in one streaming pass (same shapes)."""
    r2d, n, rows = _to_lane_rows(real, 1.0)
    f2d, _, _ = _to_lane_rows(fake, 0.0)
    block_rows, total_tiles, num_parts, inner_tiles, need_mask = _grid_config(rows)
    index_map = _make_index_map(inner_tiles, total_tiles)

    kernel = functools.partial(
        _fused_sq_err_kernel, n_rows=rows, inner_tiles=inner_tiles,
        need_mask=need_mask)

    partials = pl.pallas_call(
        kernel,
        out_shape=jax.ShapeDtypeStruct((num_parts, 1), jnp.float32),
        grid_spec=pltpu.PrefetchScalarGridSpec(
            num_scalar_prefetch=0,
            grid=(num_parts, inner_tiles),
            in_specs=[
                pl.BlockSpec((block_rows, _LANES), index_map),
                pl.BlockSpec((block_rows, _LANES), index_map),
            ],
            out_specs=pl.BlockSpec((1, 1), lambda p, i: (p, 0),
                                   memory_space=pltpu.SMEM),
            scratch_shapes=[pltpu.VMEM((block_rows, _LANES), jnp.float32)],
        ),
        compiler_params=pltpu.CompilerParams(
            dimension_semantics=("parallel", "arbitrary")),
    )(r2d, f2d)

    return jnp.sum(partials), n


def _sum_sq_err(x, c):
    """Returns (sum((x - c)^2), element_count) via a streaming Pallas kernel."""
    x2d, n, rows = _to_lane_rows(x, float(c))
    block_rows, total_tiles, num_parts, inner_tiles, need_mask = _grid_config(rows)
    index_map = _make_index_map(inner_tiles, total_tiles)

    kernel = functools.partial(
        _sq_err_kernel, c=float(c), n_rows=rows, inner_tiles=inner_tiles,
        need_mask=need_mask)

    partials = pl.pallas_call(
        kernel,
        out_shape=jax.ShapeDtypeStruct((num_parts, 1), jnp.float32),
        grid_spec=pltpu.PrefetchScalarGridSpec(
            num_scalar_prefetch=0,
            grid=(num_parts, inner_tiles),
            in_specs=[pl.BlockSpec((block_rows, _LANES), index_map)],
            out_specs=pl.BlockSpec((1, 1), lambda p, i: (p, 0),
                                   memory_space=pltpu.SMEM),
            scratch_shapes=[pltpu.VMEM((block_rows, _LANES), jnp.float32)],
        ),
        compiler_params=pltpu.CompilerParams(
            dimension_semantics=("parallel", "arbitrary")),
    )(x2d)

    return jnp.sum(partials), n


@jax.jit
def discriminator_loss(prob_real_is_real, prob_fake_is_real):
    if prob_real_is_real.shape == prob_fake_is_real.shape:
        # Fast path: one fused kernel, each tensor streamed exactly once.
        total, n = _fused_sum_sq(prob_real_is_real, prob_fake_is_real)
        return total / jnp.float32(2 * n)
    # General path: independent streaming reductions per tensor.
    sum_r, n_r = _sum_sq_err(prob_real_is_real, 1.0)   # sum((real - 1)^2)
    sum_f, n_f = _sum_sq_err(prob_fake_is_real, 0.0)   # sum(fake^2)
    mean_r = sum_r / jnp.float32(n_r)
    mean_f = sum_f / jnp.float32(n_f)
    return (mean_r + mean_f) * jnp.float32(0.5)


if __name__ == "__main__":
    key = jax.random.PRNGKey(0)
    k1, k2, k3 = jax.random.split(key, 3)

    # Discriminator probability maps in NCHW (patch-GAN style outputs).
    prob_real = jax.random.uniform(k1, (2, 4, 16, 16), dtype=jnp.float32)
    prob_fake = jax.random.uniform(k2, (2, 4, 16, 16), dtype=jnp.float32)

    # Fast (fused, same-shape) path.
    loss = discriminator_loss(prob_real, prob_fake)
    loss = jax.block_until_ready(loss)
    ref = (jnp.mean((prob_real - 1.0) ** 2) + jnp.mean(prob_fake ** 2)) * 0.5
    assert jnp.allclose(loss, ref, rtol=1e-6, atol=1e-6), (loss, ref)

    # General (mismatched-shape) path, also exercises the lane-tail padding.
    prob_fake_b = jax.random.uniform(k3, (2, 1, 30, 30), dtype=jnp.float32)
    loss_b = discriminator_loss(prob_real, prob_fake_b)
    loss_b = jax.block_until_ready(loss_b)
    ref_b = (jnp.mean((prob_real - 1.0) ** 2) + jnp.mean(prob_fake_b ** 2)) * 0.5
    assert jnp.allclose(loss_b, ref_b, rtol=1e-6, atol=1e-6), (loss_b, ref_b)

    print("KERNEL_OK")
</pallas_src>

<mosaic_0001>
module attributes {stable_mosaic.version = 11 : i64} {
  func.func @_fused_sq_err_kernel(%arg0: i32, %arg1: i32, %arg2: memref<16x128xf32, #tpu.memory_space<vmem>>, %arg3: memref<16x128xf32, #tpu.memory_space<vmem>>, %arg4: memref<1x1xf32, #tpu.memory_space<smem>>, %arg5: memref<16x128xf32, #tpu.memory_space<vmem>>) attributes {dimension_semantics = [#tpu.dimension_semantics<parallel>, #tpu.dimension_semantics<arbitrary>], iteration_bounds = array<i64: 1, 1>, scalar_prefetch = 0 : i64, scratch_operands = 1 : i64, tpu.core_type = #tpu.core_type<tc>, window_params = [{transform_indices = @transform_0, window_bounds = array<i64: 16, 128>}, {transform_indices = @transform_1, window_bounds = array<i64: 16, 128>}, {transform_indices = @transform_2, window_bounds = array<i64: 1, 1>}]} {
    %c0_i32 = arith.constant 0 : i32
    %0 = arith.cmpi eq, %arg1, %c0_i32 : i32
    %1 = arith.extui %0 : i1 to i32
    %c0_i32_0 = arith.constant 0 : i32
    %2 = arith.cmpi ne, %1, %c0_i32_0 : i32
    scf.if %2 {
      %cst_10 = arith.constant 0.000000e+00 : f32
      %16 = vector.broadcast %cst_10 : f32 to vector<16x128xf32>
      %c0_11 = arith.constant 0 : index
      %c0_12 = arith.constant 0 : index
      %17 = vector.load %arg5[%c0_11, %c0_12] : memref<16x128xf32, #tpu.memory_space<vmem>>, vector<16x128xf32>
      tpu.vector_store %arg5[%c0_11, %c0_12], %16 {strides = array<i32>} : memref<16x128xf32, #tpu.memory_space<vmem>>, vector<16x128xf32>,
    } else {
    }
    %c0 = arith.constant 0 : index
    %c0_1 = arith.constant 0 : index
    %3 = vector.load %arg2[%c0, %c0_1] : memref<16x128xf32, #tpu.memory_space<vmem>>, vector<16x128xf32>
    %cst = arith.constant 1.000000e+00 : f32
    %4 = vector.broadcast %cst : f32 to vector<16x128xf32>
    %5 = arith.subf %3, %4 : vector<16x128xf32>
    %c0_2 = arith.constant 0 : index
    %c0_3 = arith.constant 0 : index
    %6 = vector.load %arg3[%c0_2, %c0_3] : memref<16x128xf32, #tpu.memory_space<vmem>>, vector<16x128xf32>
    %7 = arith.mulf %5, %5 : vector<16x128xf32>
    %8 = arith.mulf %6, %6 : vector<16x128xf32>
    %9 = arith.addf %7, %8 : vector<16x128xf32>
    %c0_4 = arith.constant 0 : index
    %c0_5 = arith.constant 0 : index
    %10 = vector.load %arg5[%c0_4, %c0_5] : memref<16x128xf32, #tpu.memory_space<vmem>>, vector<16x128xf32>
    %11 = arith.addf %10, %9 : vector<16x128xf32>
    %c0_6 = arith.constant 0 : index
    %c0_7 = arith.constant 0 : index
    %12 = vector.load %arg5[%c0_6, %c0_7] : memref<16x128xf32, #tpu.memory_space<vmem>>, vector<16x128xf32>
    tpu.vector_store %arg5[%c0_6, %c0_7], %11 {strides = array<i32>} : memref<16x128xf32, #tpu.memory_space<vmem>>, vector<16x128xf32>,
    %c0_i32_8 = arith.constant 0 : i32
    %13 = arith.cmpi eq, %arg1, %c0_i32_8 : i32
    %14 = arith.extui %13 : i1 to i32
    %c0_i32_9 = arith.constant 0 : i32
    %15 = arith.cmpi ne, %14, %c0_i32_9 : i32
    scf.if %15 {
      %c0_10 = arith.constant 0 : index
      %c0_11 = arith.constant 0 : index
      %16 = vector.load %arg5[%c0_10, %c0_11] : memref<16x128xf32, #tpu.memory_space<vmem>>, vector<16x128xf32>
      %17 = vector.shape_cast %16 : vector<16x128xf32> to vector<1x16x128xf32>
      %cst_12 = arith.constant dense<0.000000e+00> : vector<1xf32>
      %18 = vector.multi_reduction <add>, %17, %cst_12 [1, 2] : vector<1x16x128xf32> to vector<1xf32>
      %19 = vector.shape_cast %18 : vector<1xf32> to vector<1x1x1xf32>
      %20 = vector.extract %19[0, 0, 0] : f32 from vector<1x1x1xf32>
      %c0_13 = arith.constant 0 : index
      %c0_14 = arith.constant 0 : index
      %21 = memref.load %arg4[%c0_13, %c0_14] : memref<1x1xf32, #tpu.memory_space<smem>>
      memref.store %20, %arg4[%c0_13, %c0_14] : memref<1x1xf32, #tpu.memory_space<smem>>
    } else {
    }
    return
  }
  func.func @transform_0(%arg0: i32, %arg1: i32) -> (i32, i32) {
    %c1_i32 = arith.constant 1 : i32
    %0 = arith.muli %arg0, %c1_i32 : i32
    %1 = arith.addi %0, %arg1 : i32
    %c0_i32 = arith.constant 0 : i32
    %2 = arith.minsi %1, %c0_i32 : i32
    %c0_i32_0 = arith.constant 0 : i32
    %c0_i32_1 = arith.constant 0 : i32
    return %2, %c0_i32_0 : i32, i32
  }
  func.func @transform_1(%arg0: i32, %arg1: i32) -> (i32, i32) {
    %c1_i32 = arith.constant 1 : i32
    %0 = arith.muli %arg0, %c1_i32 : i32
    %1 = arith.addi %0, %arg1 : i32
    %c0_i32 = arith.constant 0 : i32
    %2 = arith.minsi %1, %c0_i32 : i32
    %c0_i32_0 = arith.constant 0 : i32
    %c0_i32_1 = arith.constant 0 : i32
    return %2, %c0_i32_0 : i32, i32
  }
  func.func @transform_2(%arg0: i32, %arg1: i32) -> (i32, i32) {
    %c0_i32 = arith.constant 0 : i32
    %c0_i32_0 = arith.constant 0 : i32
    return %arg0, %c0_i32 : i32, i32
  }
}

</mosaic_0001>

<llo_original>
// kernel: discriminator_loss.1
$region0: #{discriminator_loss.1}
  #allocation0 [shape = 'u32[]', space=smem, size = 0x4, offset = 0x4, fixed_abs, tag = 'smem constant byte address 0x4 - core index']
  #allocation1 [shape = 'u32[144,128]{1,0:T(1,128)}', space=vmem, size = 0x12000, scoped, tag = 'internal scratch']
  #allocation2 [shape = 'f32[16,128]{1,0:T(8,128)}', space=vmem, size = 0x2000, scoped, tag = 'scratch operand']
  %s0 = inlined_call_operand.vmem [shape: f32[16,128], index: 0, kind: input, shape index: {}]
  %s1 = inlined_call_operand.vmem [shape: f32[16,128], index: 1, kind: input, shape index: {}]
  %s2 = inlined_call_operand.hbm [shape: f32[1,1], index: 2, kind: output, shape index: {}]
  %s3 = sld [smem:[#allocation0]]
  $region26: #{discriminator_loss.1} parent=0
    _
  %s5 = ssub.s32 1, %s3
  %s6 = scalar_select 0, %s5, %s3
  $region1: #{discriminator_loss.1} parent=0
    #allocation3 [shape = 'u8[512]{0}', space=smem, size = 0x200, scoped, tag = 'output window, operand 0, single buffered']
    #allocation4 [shape = 's32[1]{0}', space=sflag, size = 0x4, scoped, tag = 'scoped memory for discriminator_loss.1']
    %7 = vsyncpa [#allocation4], 0
    // Predicated region
    $region2: #{discriminator_loss.1} parent=1 // pred_check
      _
    $region3: #{discriminator_loss.1} parent=1 // pred_check_branch
      %9 = sbr.rel (0) target = $region5
    $region4: #{discriminator_loss.1} parent=1 // pred_region
      %s10 = sadd.s32 0, 0
      %p11 = scmp.lt.s32.totalorder %s10, 0
      %s12 = scalar_select %p11, %s10, 0
      %s13 = smul.u32 2, %s12
      %p14 = scmp.lt.s32.totalorder %s13, 1
      %s15 = scalar_select %p14, %s13, 1
      %s16 = smul.addr %s15, 8
      %s17 = scalar_lea.vmem %s0, %s16
      %s18 = sadd.s32 0, 0
      %p19 = scmp.lt.s32.totalorder %s18, 0
      %s20 = scalar_select %p19, %s18, 0
      %s21 = smul.u32 2, %s20
    $region5: #{discriminator_loss.1} parent=1 // pred_fallthru
      _
    // Predicated region
    $region6: #{discriminator_loss.1} parent=1 // pred_check
      _
    $region7: #{discriminator_loss.1} parent=1 // pred_check_branch
      %23 = sbr.rel (0) target = $region9
    $region8: #{discriminator_loss.1} parent=1 // pred_region
      %s24 = sadd.s32 0, 0
      %p25 = scmp.lt.s32.totalorder %s24, 0
      %s26 = scalar_select %p25, %s24, 0
      %s27 = smul.u32 2, %s26
      %p28 = scmp.lt.s32.totalorder %s27, 1
      %s29 = scalar_select %p28, %s27, 1
      %s30 = smul.addr %s29, 8
      %s31 = scalar_lea.vmem %s1, %s30
      %s32 = sadd.s32 0, 0
      %p33 = scmp.lt.s32.totalorder %s32, 0
      %s34 = scalar_select %p33, %s32, 0
      %s35 = smul.u32 2, %s34
    $region9: #{discriminator_loss.1} parent=1 // pred_fallthru
      _
    %s36 = sadd.s32 0, 0
    %p37 = scmp.lt.s32.totalorder %s36, 0
    %s38 = scalar_select %p37, %s36, 0
    %s39 = smul.u32 2, %s38
    %p40 = scmp.lt.s32.totalorder %s39, 1
    %s41 = scalar_select %p40, %s39, 1
    %s42 = smul.addr %s41, 8
    %s43 = scalar_lea.vmem %s0, %s42
    %s44 = sadd.s32 0, 0
    %p45 = scmp.lt.s32.totalorder %s44, 0
    %s46 = scalar_select %p45, %s44, 0
    %s47 = smul.u32 2, %s46
    %p48 = scmp.lt.s32.totalorder %s47, 1
    %s49 = scalar_select %p48, %s47, 1
    %s50 = smul.addr %s49, 8
    %s51 = scalar_lea.vmem %s1, %s50
    %s52 = sadd.s32 0, 0
    %p53 = scmp.lt.s32.totalorder %s52, 0
    %s54 = scalar_select %p53, %s52, 0
    %s55 = smul.u32 2, %s54
    %p56 = scmp.lt.s32.totalorder %s55, 1
    %s57 = scalar_select %p56, %s55, 1
    %s58 = smul.addr %s57, 8
    %s59 = scalar_lea.vmem %s0, %s58
    %s60 = sadd.s32 0, 0
    %p61 = scmp.lt.s32.totalorder %s60, 0
    %s62 = scalar_select %p61, %s60, 0
    %s63 = smul.u32 2, %s62
    %s64 = sadd.s32 0, 0
    %p65 = scmp.lt.s32.totalorder %s64, 0
    %s66 = scalar_select %p65, %s64, 0
    %s67 = smul.u32 2, %s66
    %p68 = scmp.lt.s32.totalorder %s67, 1
    %s69 = scalar_select %p68, %s67, 1
    %s70 = smul.addr %s69, 8
    %s71 = scalar_lea.vmem %s1, %s70
    %s72 = sadd.s32 0, 0
    %p73 = scmp.lt.s32.totalorder %s72, 0
    %s74 = scalar_select %p73, %s72, 0
    %s75 = smul.u32 2, %s74
    %p76 = scmp.eq.s32.totalorder 0, 0
    // Predicated region
    $region10: #{discriminator_loss.1} parent=1 // pred_check
      %p77 = pneg %p76
    $region11: #{discriminator_loss.1} parent=1 // pred_check_branch
      %79 = sbr.rel (%p77) target = $region13
    $region12: #{discriminator_loss.1} parent=1 // pred_region
      %80 = vst [vmem:[#allocation2] sm:$0xff] 0.0
      %81 = vst [vmem:[#allocation2 + $0x8] sm:$0xff] 0.0
    $region13: #{discriminator_loss.1} parent=1 // pred_fallthru
      _
    %v82 = vld [vmem:[%s59] sm:$0xff]
    %v83 = vld [vmem:[%s59 + $0x8] sm:$0xff]
    %v84 = vsub.f32 %v82, 1.0
    %v85 = vsub.f32 %v83, 1.0
    %v86 = vld [vmem:[%s71] sm:$0xff]
    %v87 = vld [vmem:[%s71 + $0x8] sm:$0xff]
    %v88 = vmul.f32 %v84, %v84
    %v89 = vmul.f32 %v85, %v85
    %v90 = vmul.f32 %v86, %v86
    %v91 = vmul.f32 %v87, %v87
    %v92 = vadd.f32 %v88, %v90
    %v93 = vadd.f32 %v89, %v91
    %v94 = vld [vmem:[#allocation2] sm:$0xff]
    %v95 = vld [vmem:[#allocation2 + $0x8] sm:$0xff]
    %v96 = vadd.f32 %v94, %v92
    %v97 = vadd.f32 %v95, %v93
    %98 = vst [vmem:[#allocation2] sm:$0xff] %v96
    %99 = vst [vmem:[#allocation2 + $0x8] sm:$0xff] %v97
    // Predicated region
    $region14: #{discriminator_loss.1} parent=1 // pred_check
      %p100 = pneg %p76
    $region15: #{discriminator_loss.1} parent=1 // pred_check_branch
      %102 = sbr.rel (%p100) target = $region17
    $region16: #{discriminator_loss.1} parent=1 // pred_region
      %v103 = vld [vmem:[#allocation2] sm:$0xff]
      %v104 = vld [vmem:[#allocation2 + $0x8] sm:$0xff]
      %v105 = vadd.f32 %v103, %v104
      %106 = vadd.xlane.f32.xlu0 %v105
      %v107 = vpop.xlane.xlu0 %106
      %v108 = vrot.slane %v107, 4
      %v109 = vadd.f32 %v107, %v108
      %v110 = vrot.slane %v109, 2
      %v111 = vadd.f32 %v109, %v110
      %v112 = vrot.slane %v111, 1
      %v113 = vadd.f32 %v111, %v112
      %s114 = vtos %v113
      %s115 = scalar_lea.smem [#allocation3], 0
      %116 = sst [smem:[%s115]] %s114
    $region17: #{discriminator_loss.1} parent=1 // pred_fallthru
      _
    // Predicated region
    $region18: #{discriminator_loss.1} parent=1 // pred_check
      _
    $region19: #{discriminator_loss.1} parent=1 // pred_check_branch
      %118 = sbr.rel (0) target = $region21
    $region20: #{discriminator_loss.1} parent=1 // pred_region
      %s120 = ssub.s32 16, 16
      %121 = vsyncadd [#allocation4], %s120
      %124 = dma.smem_to_hbm [#allocation3], 16, %s2, [#allocation4]
    $region21: #{discriminator_loss.1} parent=1 // pred_fallthru
      _
    // Predicated region
    $region22: #{discriminator_loss.1} parent=1 // pred_check
      _
    $region23: #{discriminator_loss.1} parent=1 // pred_check_branch
      %126 = sbr.rel (0) target = $region25
    $region24: #{discriminator_loss.1} parent=1 // pred_region
      %127 = dma.done [#allocation4], 16
    $region25: #{discriminator_loss.1} parent=1 // pred_fallthru
      _
    %128 = sfence
    %129 = vsyncpa [#allocation4], 1

</llo_original>
